<compile_context>
chip_gen: v5e
topology: v5e:2x2
jax: 0.10.0
libtpu: 0.0.40
codegen_flags: <defaults>
</compile_context>

<pallas_src>
import jax
import jax.numpy as jnp
import numpy as np
from jax.experimental import pallas as pl
from jax.experimental.pallas import tpu as pltpu

POOL_KERNEL = 3
POOL_STRIDE = 2
POOL_NUM = 2


def _pooled_len(length: int) -> int:
    return (length - (POOL_KERNEL - 1) - 1) // POOL_STRIDE + 1


def _effective_pool():
    """Window/stride of POOL_NUM stacked MaxPool1d(POOL_KERNEL, POOL_STRIDE).

    Because POOL_STRIDE < POOL_KERNEL the stacked windows cover a contiguous
    index range, so the composition is itself a single max over a wider window:
    for (k=3, s=2) x2 -> window 7, stride 4.
    """
    eff_k, eff_s = POOL_KERNEL, POOL_STRIDE
    for _ in range(POOL_NUM - 1):
        eff_k = eff_k + (POOL_KERNEL - 1) * eff_s
        eff_s = eff_s * POOL_STRIDE
    return eff_k, eff_s


def _downsample_h_kernel(h_ref, w_ref, b_ref, out_ref):
    # h_ref: (TB, C*L) VMEM (contiguous batch-row DMA)
    # w_ref: (C, Lf)   VMEM (small resident weight)
    # b_ref: (1, 1)    SMEM (scalar bias)
    # out_ref: (1, TB) VMEM (batch on lanes -> lane-dense stores)
    TB, CL = h_ref.shape
    C, Lf = w_ref.shape
    L = CL // C
    eff_k, eff_s = _effective_pool()

    # One in-VMEM transpose per tile puts batch on the lane axis; it is much
    # shorter than (and overlaps with) the HBM->VMEM DMA of the next tile.
    ht = jnp.transpose(h_ref[...], (1, 0))          # (C*L, TB)
    # Split only the leading (non-lane) dim: row c*L + pos -> (c, pos).  The lane
    # dim is untouched and L is a multiple of 8, so this is layout-preserving.
    h3 = ht.reshape(C, L, TB)                       # (C, L, TB)

    # Hoist the weight column slices + their lane-broadcast out of the loop.
    w = w_ref[...].astype(jnp.float32)              # (C, Lf)
    w_cols = [w[:, l:l + 1] for l in range(Lf)]     # Lf x (C, 1)

    # Static loop: Lf == 3 for h_size == 16.  (If Lf ever grows large, switch to
    # lax.fori_loop(..., unroll=True) to bound live ranges.)
    acc = jnp.zeros((C, TB), jnp.float32)
    for l in range(Lf):
        win = h3[:, eff_s * l: eff_s * l + eff_k, :]     # (C, eff_k, TB)
        m = jnp.max(win, axis=1)                         # (C, TB) fused double max-pool
        acc = acc + m.astype(jnp.float32) * w_cols[l]
    # Flatten + Linear(C*Lf, 1): remaining reduce is over channels (C == 8 -> one
    # cheap sublane reduction); output stays lane-dense.
    out_ref[...] = jnp.sum(acc, axis=0, keepdims=True) + b_ref[0, 0]


def _choose_batch_tile(batch: int, feat: int, itemsize: int,
                       target_bytes: int = 4 << 20) -> int:
    """~4 MiB of input per grid step (amortizes the ~0.35 us/step overhead),
    lane-aligned, and capped at B/2 for large B so the 'parallel' batch grid
    keeps >= 2 steps (v7x: both TensorCores get work)."""
    if batch <= 256:
        return batch                        # single tile; too small to split usefully
    tb = max(128, target_bytes // (feat * itemsize))
    tb = min(tb, batch // 2)                # keep >= 2 grid steps for v7x megacore
    tb = max(128, (tb // 128) * 128)        # multiple of 128 (lane-aligned output tile)
    return min(tb, batch)


def downsample_h(h, w2d, bias):
    """h: (B, C, L); w2d: (C, Lf) f32 (Linear weight in PyTorch flatten order);
    bias: (1, 1) f32  ->  (B, 1) f32."""
    B, C, L = h.shape
    C_w, Lf = w2d.shape
    assert C_w == C
    assert Lf == _pooled_len(_pooled_len(L))
    eff_k, eff_s = _effective_pool()
    assert eff_s * (Lf - 1) + eff_k <= L

    CL = C * L
    # Free reshape: (B, C, L) is already row-major contiguous.  No HBM transpose.
    # (Optional further win: feed h as bfloat16 — maxima + f32 accumulation are
    # numerically safe and it halves HBM bytes for this memory-bound op.)
    h_flat = h.reshape(B, CL)

    TB = _choose_batch_tile(B, CL, h.dtype.itemsize)
    grid = (pl.cdiv(B, TB),)

    tile_in_bytes = TB * CL * h.dtype.itemsize
    # Double-buffered input tiles + the in-kernel transposed copy + headroom.
    # Clamped to 32 MiB so we never over-claim on v7x (64 MiB physical VMEM).
    vmem_limit = int(min(max(4 * tile_in_bytes + (2 << 20), 16 << 20), 32 << 20))

    cost = pl.CostEstimate(
        flops=B * C * Lf * (eff_k + 1) + B * (C + 1),    # maxima + mul/add + channel reduce
        transcendentals=0,
        bytes_accessed=h_flat.size * h_flat.dtype.itemsize + w2d.size * 4 + B * 4 + 4,
    )

    out = pl.pallas_call(
        _downsample_h_kernel,
        out_shape=jax.ShapeDtypeStruct((1, B), jnp.float32),
        grid=grid,
        in_specs=[
            pl.BlockSpec((TB, CL), lambda i: (i, 0)),            # contiguous batch rows
            pl.BlockSpec((C, Lf), lambda i: (0, 0)),             # small resident weight
            pl.BlockSpec(memory_space=pltpu.MemorySpace.SMEM),   # scalar bias in SMEM
        ],
        out_specs=pl.BlockSpec((1, TB), lambda i: (0, i)),       # lane-dense output
        compiler_params=pltpu.CompilerParams(
            dimension_semantics=("parallel",),
            vmem_limit_bytes=vmem_limit,
        ),
        cost_estimate=cost,
    )(h_flat, w2d, bias)

    return out.reshape(B, 1)


def _reference(h, w2d, bias):
    # Pure-JAX reference: explicit two-stage MaxPool1d + flatten + linear (f32).
    x = h
    for _ in range(POOL_NUM):
        L = x.shape[-1]
        Lp = _pooled_len(L)
        x = jnp.stack(
            [jnp.max(x[..., POOL_STRIDE * l: POOL_STRIDE * l + POOL_KERNEL], axis=-1)
             for l in range(Lp)],
            axis=-1,
        )
    flat = x.reshape(x.shape[0], -1)            # (B, C*Lp), PyTorch flatten order
    w_flat = w2d.reshape(1, -1)                 # (1, C*Lp)
    return jnp.sum(flat * w_flat, axis=-1, keepdims=True) + bias[0, 0]


if __name__ == "__main__":
    # Config consistent with the module: h_size=16, embed_size=4, bi=2.
    embed_size = 4
    bi = 2
    h_size = 16
    channels = embed_size * bi                  # MaxPool1d channel dim
    l_final = _pooled_len(_pooled_len(h_size))  # pool_dim_func(2, h_size)
    linear_feature = l_final * channels         # == l_final * embed_size * bi

    key = jax.random.PRNGKey(0)
    k_h, k_w, k_b, k_h2 = jax.random.split(key, 4)

    # nn.Linear(linear_feature, 1): weight (1, linear_feature), bias (1,).
    w = jax.random.normal(k_w, (1, linear_feature), dtype=jnp.float32) * 0.05
    b = jax.random.normal(k_b, (1,), dtype=jnp.float32) * 0.05
    # Reshape the flat Linear weight to (C, L_final) to match PyTorch's flatten
    # ordering (feature index = c * L_final + l).
    w2d = w.reshape(channels, l_final)
    bias2d = b.reshape(1, 1)

    # Case 1: tiny batch (single tile).
    batch = 2
    h = jax.random.normal(k_h, (batch, channels, h_size), dtype=jnp.float32)
    out = jax.block_until_ready(downsample_h(h, w2d, bias2d))
    ref = _reference(h, w2d, bias2d)
    np.testing.assert_allclose(np.asarray(out), np.asarray(ref), rtol=1e-5, atol=1e-5)

    # Case 2: batch-tiled grid with a padded last block (exercises the pipeline).
    batch2 = 400
    h2 = jax.random.normal(k_h2, (batch2, channels, h_size), dtype=jnp.float32)
    out2 = jax.block_until_ready(downsample_h(h2, w2d, bias2d))
    ref2 = _reference(h2, w2d, bias2d)
    np.testing.assert_allclose(np.asarray(out2), np.asarray(ref2), rtol=1e-5, atol=1e-5)

    print("KERNEL_OK")
</pallas_src>

<mosaic_0001>
module attributes {stable_mosaic.version = 11 : i64} {
  func.func @_downsample_h_kernel(%arg0: i32, %arg1: memref<2x128xf32, #tpu.memory_space<vmem>>, %arg2: memref<8x3xf32, #tpu.memory_space<vmem>>, %arg3: memref<1x1xf32, #tpu.memory_space<smem>>, %arg4: memref<1x2xf32, #tpu.memory_space<vmem>>) attributes {dimension_semantics = [#tpu.dimension_semantics<parallel>], iteration_bounds = array<i64: 1>, scalar_prefetch = 0 : i64, scratch_operands = 0 : i64, tpu.core_type = #tpu.core_type<tc>, window_params = [{transform_indices = @transform_0, window_bounds = array<i64: 2, 128>}, {pipeline_mode = #tpu.pipeline_mode<synchronous>, transform_indices = @transform_1, window_bounds = array<i64: 8, 3>}, {transform_indices = @transform_2, window_bounds = array<i64: 1, 1>}, {transform_indices = @transform_3, window_bounds = array<i64: 1, 2>}]} {
    %c0 = arith.constant 0 : index
    %c0_0 = arith.constant 0 : index
    %0 = vector.load %arg1[%c0, %c0_0] : memref<2x128xf32, #tpu.memory_space<vmem>>, vector<2x128xf32>
    %1 = tpu.transpose %0, [1, 0] : vector<2x128xf32> -> vector<128x2xf32>
    %2 = vector.shape_cast %1 : vector<128x2xf32> to vector<8x16x2xf32>
    %c0_1 = arith.constant 0 : index
    %c0_2 = arith.constant 0 : index
    %3 = vector.load %arg2[%c0_1, %c0_2] : memref<8x3xf32, #tpu.memory_space<vmem>>, vector<8x3xf32>
    %4 = vector.extract_strided_slice %3 {offsets = [0, 0], sizes = [8, 1], strides = [1, 1]} : vector<8x3xf32> to vector<8x1xf32>
    %5 = vector.extract_strided_slice %3 {offsets = [0, 1], sizes = [8, 1], strides = [1, 1]} : vector<8x3xf32> to vector<8x1xf32>
    %6 = vector.extract_strided_slice %3 {offsets = [0, 2], sizes = [8, 1], strides = [1, 1]} : vector<8x3xf32> to vector<8x1xf32>
    %cst = arith.constant 0.000000e+00 : f32
    %7 = vector.broadcast %cst : f32 to vector<8x2xf32>
    %8 = vector.extract_strided_slice %2 {offsets = [0, 0, 0], sizes = [8, 7, 2], strides = [1, 1, 1]} : vector<8x16x2xf32> to vector<8x7x2xf32>
    %cst_3 = arith.constant dense<0xFF800000> : vector<8x2xf32>
    %9 = vector.multi_reduction <maximumf>, %8, %cst_3 [1] : vector<8x7x2xf32> to vector<8x2xf32>
    %10 = vector.broadcast %4 : vector<8x1xf32> to vector<8x2xf32>
    %11 = arith.mulf %9, %10 : vector<8x2xf32>
    %12 = arith.addf %7, %11 : vector<8x2xf32>
    %13 = vector.extract_strided_slice %2 {offsets = [0, 4, 0], sizes = [8, 7, 2], strides = [1, 1, 1]} : vector<8x16x2xf32> to vector<8x7x2xf32>
    %cst_4 = arith.constant dense<0xFF800000> : vector<8x2xf32>
    %14 = vector.multi_reduction <maximumf>, %13, %cst_4 [1] : vector<8x7x2xf32> to vector<8x2xf32>
    %15 = vector.broadcast %5 : vector<8x1xf32> to vector<8x2xf32>
    %16 = arith.mulf %14, %15 : vector<8x2xf32>
    %17 = arith.addf %12, %16 : vector<8x2xf32>
    %18 = vector.extract_strided_slice %2 {offsets = [0, 8, 0], sizes = [8, 7, 2], strides = [1, 1, 1]} : vector<8x16x2xf32> to vector<8x7x2xf32>
    %cst_5 = arith.constant dense<0xFF800000> : vector<8x2xf32>
    %19 = vector.multi_reduction <maximumf>, %18, %cst_5 [1] : vector<8x7x2xf32> to vector<8x2xf32>
    %20 = vector.broadcast %6 : vector<8x1xf32> to vector<8x2xf32>
    %21 = arith.mulf %19, %20 : vector<8x2xf32>
    %22 = arith.addf %17, %21 : vector<8x2xf32>
    %cst_6 = arith.constant dense<0.000000e+00> : vector<2xf32>
    %23 = vector.multi_reduction <add>, %22, %cst_6 [0] : vector<8x2xf32> to vector<2xf32>
    %24 = vector.shape_cast %23 : vector<2xf32> to vector<1x2xf32>
    %c0_7 = arith.constant 0 : index
    %c0_8 = arith.constant 0 : index
    %25 = memref.load %arg3[%c0_7, %c0_8] : memref<1x1xf32, #tpu.memory_space<smem>>
    %26 = vector.broadcast %25 : f32 to vector<1x2xf32>
    %27 = arith.addf %24, %26 : vector<1x2xf32>
    %c0_9 = arith.constant 0 : index
    %c0_10 = arith.constant 0 : index
    %28 = vector.load %arg4[%c0_9, %c0_10] : memref<1x2xf32, #tpu.memory_space<vmem>>, vector<1x2xf32>
    tpu.vector_store %arg4[%c0_9, %c0_10], %27 {strides = array<i32>} : memref<1x2xf32, #tpu.memory_space<vmem>>, vector<1x2xf32>,
    return
  }
  func.func @transform_0(%arg0: i32) -> (i32, i32) {
    %c0_i32 = arith.constant 0 : i32
    %c0_i32_0 = arith.constant 0 : i32
    return %arg0, %c0_i32 : i32, i32
  }
  func.func @transform_1(%arg0: i32) -> (i32, i32) {
    %c0_i32 = arith.constant 0 : i32
    %c0_i32_0 = arith.constant 0 : i32
    %c0_i32_1 = arith.constant 0 : i32
    return %c0_i32, %c0_i32_0 : i32, i32
  }
  func.func @transform_2(%arg0: i32) -> (i32, i32) {
    %c0_i32 = arith.constant 0 : i32
    %c0_i32_0 = arith.constant 0 : i32
    %c0_i32_1 = arith.constant 0 : i32
    return %c0_i32, %c0_i32_0 : i32, i32
  }
  func.func @transform_3(%arg0: i32) -> (i32, i32) {
    %c0_i32 = arith.constant 0 : i32
    %c0_i32_0 = arith.constant 0 : i32
    return %c0_i32, %arg0 : i32, i32
  }
}

</mosaic_0001>

<llo_original>
// kernel: tpu_custom_call.1
$region0: #{tpu_custom_call.1}
  #allocation0 [shape = 'u32[]', space=smem, size = 0x4, offset = 0x4, fixed_abs, tag = 'smem constant byte address 0x4 - core index']
  #allocation1 [shape = 'u32[72,128]{1,0:T(1,128)}', space=vmem, size = 0x9000, scoped, tag = 'internal scratch']
  #allocation2 [shape = 'f32[1,1]{1,0:T(1,128)S(6)}', space=smem, size = 0x200, scoped, tag = 'scoped memory for tpu_custom_call.1']
  %s0 = inlined_call_operand.vmem [shape: f32[2,128], index: 0, kind: input, shape index: {}]
  %s1 = inlined_call_operand.vmem [shape: f32[8,3], index: 1, kind: input, shape index: {}]
  %s2 = inlined_call_operand.<no memory space> [shape: f32[1,1], index: 2, kind: input, shape index: {}]
  %s3 = inlined_call_operand.hbm [shape: f32[1,2], index: 3, kind: output, shape index: {}]
  %s4 = sld [smem:[#allocation0]]
  $region22: #{tpu_custom_call.1} parent=0
    _
  %s6 = ssub.s32 1, %s4
  %s7 = scalar_select 0, %s6, %s4
  %8 = sst [smem:[#allocation2]] %s2
  $region1: #{tpu_custom_call.1} parent=0
    #allocation3 [shape = 'u8[512]{0}', space=vmem, size = 0x400, scoped, tag = 'output window, operand 0, single buffered']
    #allocation4 [shape = 's32[1]{0}', space=sflag, size = 0x4, scoped, tag = 'scoped memory for tpu_custom_call.1']
    %9 = vsyncpa [#allocation4], 0
    // Predicated region
    $region2: #{tpu_custom_call.1} parent=1 // pred_check
      _
    $region3: #{tpu_custom_call.1} parent=1 // pred_check_branch
      %11 = sbr.rel (0) target = $region5
    $region4: #{tpu_custom_call.1} parent=1 // pred_region
      _
    $region5: #{tpu_custom_call.1} parent=1 // pred_fallthru
      _
    // Predicated region
    $region6: #{tpu_custom_call.1} parent=1 // pred_check
      _
    $region7: #{tpu_custom_call.1} parent=1 // pred_check_branch
      %13 = sbr.rel (0) target = $region9
    $region8: #{tpu_custom_call.1} parent=1 // pred_region
      _
    $region9: #{tpu_custom_call.1} parent=1 // pred_fallthru
      _
    // Predicated region
    $region10: #{tpu_custom_call.1} parent=1 // pred_check
      _
    $region11: #{tpu_custom_call.1} parent=1 // pred_check_branch
      %15 = sbr.rel (0) target = $region13
    $region12: #{tpu_custom_call.1} parent=1 // pred_region
      _
    $region13: #{tpu_custom_call.1} parent=1 // pred_fallthru
      _
    %v16 = vld [vmem:[%s0] sm:$0x3]
    %17 = vxpose.xlu0.b32.start [1/16] %v16, 128
    %18 = vxpose.xlu0.b32.cont [2/16] 0.0, 128
    %19 = vxpose.xlu0.b32.cont [3/16] 0.0, 128
    %20 = vxpose.xlu0.b32.cont [4/16] 0.0, 128
    %21 = vxpose.xlu0.b32.cont [5/16] 0.0, 128
    %22 = vxpose.xlu0.b32.cont [6/16] 0.0, 128
    %23 = vxpose.xlu0.b32.cont [7/16] 0.0, 128
    %24 = vxpose.xlu0.b32.cont [8/16] 0.0, 128
    %25 = vxpose.xlu0.b32.cont [9/16] 0.0, 128
    %26 = vxpose.xlu0.b32.cont [10/16] 0.0, 128
    %27 = vxpose.xlu0.b32.cont [11/16] 0.0, 128
    %28 = vxpose.xlu0.b32.cont [12/16] 0.0, 128
    %29 = vxpose.xlu0.b32.cont [13/16] 0.0, 128
    %30 = vxpose.xlu0.b32.cont [14/16] 0.0, 128
    %31 = vxpose.xlu0.b32.cont [15/16] 0.0, 128
    %32 = vxpose.xlu0.b32.end [16/16] 0.0, 128
    %v33 = vpop.trf.xlu0
    %v34 = vpop.trf.xlu0
    %v35 = vpop.trf.xlu0
    %v36 = vpop.trf.xlu0
    %v37 = vpop.trf.xlu0
    %v38 = vpop.trf.xlu0
    %v39 = vpop.trf.xlu0
    %v40 = vpop.trf.xlu0
    %v41 = vpop.trf.xlu0
    %v42 = vpop.trf.xlu0
    %v43 = vpop.trf.xlu0
    %v44 = vpop.trf.xlu0
    %v45 = vpop.trf.xlu0
    %v46 = vpop.trf.xlu0
    %v47 = vpop.trf.xlu0
    %v48 = vpop.trf.xlu0
    %v49 = vld [vmem:[%s1] sm:$0xff]
    %vm50 = vcmask 14336
    %v51 = vsel %vm50, %v33, -inf
    %v52 = vrot.slane %v51, 4
    %v53 = vmax.f32 %v51, %v52
    %v54 = vrot.slane %v53, 2
    %v55 = vmax.f32 %v53, %v54
    %v56 = vrot.slane %v55, 1
    %v57 = vmax.f32 %v55, %v56
    %v58 = vsel %vm50, %v35, -inf
    %v59 = vrot.slane %v58, 4
    %v60 = vmax.f32 %v58, %v59
    %v61 = vrot.slane %v60, 2
    %v62 = vmax.f32 %v60, %v61
    %v63 = vrot.slane %v62, 1
    %v64 = vmax.f32 %v62, %v63
    %v65 = vsel %vm50, %v37, -inf
    %v66 = vrot.slane %v65, 4
    %v67 = vmax.f32 %v65, %v66
    %v68 = vrot.slane %v67, 2
    %v69 = vmax.f32 %v67, %v68
    %v70 = vrot.slane %v69, 1
    %v71 = vmax.f32 %v69, %v70
    %v72 = vsel %vm50, %v39, -inf
    %v73 = vrot.slane %v72, 4
    %v74 = vmax.f32 %v72, %v73
    %v75 = vrot.slane %v74, 2
    %v76 = vmax.f32 %v74, %v75
    %v77 = vrot.slane %v76, 1
    %v78 = vmax.f32 %v76, %v77
    %v79 = vsel %vm50, %v41, -inf
    %v80 = vrot.slane %v79, 4
    %v81 = vmax.f32 %v79, %v80
    %v82 = vrot.slane %v81, 2
    %v83 = vmax.f32 %v81, %v82
    %v84 = vrot.slane %v83, 1
    %v85 = vmax.f32 %v83, %v84
    %v86 = vsel %vm50, %v43, -inf
    %v87 = vrot.slane %v86, 4
    %v88 = vmax.f32 %v86, %v87
    %v89 = vrot.slane %v88, 2
    %v90 = vmax.f32 %v88, %v89
    %v91 = vrot.slane %v90, 1
    %v92 = vmax.f32 %v90, %v91
    %v93 = vsel %vm50, %v45, -inf
    %v94 = vrot.slane %v93, 4
    %v95 = vmax.f32 %v93, %v94
    %v96 = vrot.slane %v95, 2
    %v97 = vmax.f32 %v95, %v96
    %v98 = vrot.slane %v97, 1
    %v99 = vmax.f32 %v97, %v98
    %v100 = vsel %vm50, %v47, -inf
    %v101 = vrot.slane %v100, 4
    %v102 = vmax.f32 %v100, %v101
    %v103 = vrot.slane %v102, 2
    %v104 = vmax.f32 %v102, %v103
    %v105 = vrot.slane %v104, 1
    %v106 = vmax.f32 %v104, %v105
    %108 = vset.pattern.permute.xlu0 0
    %109 = vperm.xlu0 %108, %v49
    %v110 = vpop.permute.xlu0 %109
    %v111 = vrot.slane %v110, 1
    %v112 = vrot.slane %v110, 2
    %v113 = vrot.slane %v110, 3
    %v114 = vrot.slane %v110, 4
    %v115 = vrot.slane %v110, 5
    %v116 = vrot.slane %v110, 6
    %v117 = vrot.slane %v110, 7
    %v126 = vmul.f32 %v57, %v110
    %v127 = vmul.f32 %v64, %v111
    %v128 = vmul.f32 %v71, %v112
    %v129 = vmul.f32 %v78, %v113
    %v130 = vmul.f32 %v85, %v114
    %v131 = vmul.f32 %v92, %v115
    %v132 = vmul.f32 %v99, %v116
    %v133 = vmul.f32 %v106, %v117
    %v134 = vadd.f32 %v126, 0.0
    %v135 = vadd.f32 %v127, 0.0
    %v136 = vadd.f32 %v128, 0.0
    %v137 = vadd.f32 %v129, 0.0
    %v138 = vadd.f32 %v130, 0.0
    %v139 = vadd.f32 %v131, 0.0
    %v140 = vadd.f32 %v132, 0.0
    %v141 = vadd.f32 %v133, 0.0
    %vm142 = vcmask 15364
    %v143 = vsel %vm142, %v33, -inf
    %vm144 = vcmask 10240
    %v145 = vsel %vm144, %v34, -inf
    %v146 = vmax.f32 %v143, %v145
    %v147 = vrot.slane %v146, 4
    %v148 = vmax.f32 %v146, %v147
    %v149 = vrot.slane %v148, 2
    %v150 = vmax.f32 %v148, %v149
    %v151 = vrot.slane %v150, 1
    %v152 = vmax.f32 %v150, %v151
    %v153 = vsel %vm142, %v35, -inf
    %v154 = vsel %vm144, %v36, -inf
    %v155 = vmax.f32 %v153, %v154
    %v156 = vrot.slane %v155, 4
    %v157 = vmax.f32 %v155, %v156
    %v158 = vrot.slane %v157, 2
    %v159 = vmax.f32 %v157, %v158
    %v160 = vrot.slane %v159, 1
    %v161 = vmax.f32 %v159, %v160
    %v162 = vsel %vm142, %v37, -inf
    %v163 = vsel %vm144, %v38, -inf
    %v164 = vmax.f32 %v162, %v163
    %v165 = vrot.slane %v164, 4
    %v166 = vmax.f32 %v164, %v165
    %v167 = vrot.slane %v166, 2
    %v168 = vmax.f32 %v166, %v167
    %v169 = vrot.slane %v168, 1
    %v170 = vmax.f32 %v168, %v169
    %v171 = vsel %vm142, %v39, -inf
    %v172 = vsel %vm144, %v40, -inf
    %v173 = vmax.f32 %v171, %v172
    %v174 = vrot.slane %v173, 4
    %v175 = vmax.f32 %v173, %v174
    %v176 = vrot.slane %v175, 2
    %v177 = vmax.f32 %v175, %v176
    %v178 = vrot.slane %v177, 1
    %v179 = vmax.f32 %v177, %v178
    %v180 = vsel %vm142, %v41, -inf
    %v181 = vsel %vm144, %v42, -inf
    %v182 = vmax.f32 %v180, %v181
    %v183 = vrot.slane %v182, 4
    %v184 = vmax.f32 %v182, %v183
    %v185 = vrot.slane %v184, 2
    %v186 = vmax.f32 %v184, %v185
    %v187 = vrot.slane %v186, 1
    %v188 = vmax.f32 %v186, %v187
    %v189 = vsel %vm142, %v43, -inf
    %v190 = vsel %vm144, %v44, -inf
    %v191 = vmax.f32 %v189, %v190
    %v192 = vrot.slane %v191, 4
    %v193 = vmax.f32 %v191, %v192
    %v194 = vrot.slane %v193, 2
    %v195 = vmax.f32 %v193, %v194
    %v196 = vrot.slane %v195, 1
    %v197 = vmax.f32 %v195, %v196
    %v198 = vsel %vm142, %v45, -inf
    %v199 = vsel %vm144, %v46, -inf
    %v200 = vmax.f32 %v198, %v199
    %v201 = vrot.slane %v200, 4
    %v202 = vmax.f32 %v200, %v201
    %v203 = vrot.slane %v202, 2
    %v204 = vmax.f32 %v202, %v203
    %v205 = vrot.slane %v204, 1
    %v206 = vmax.f32 %v204, %v205
    %v207 = vsel %vm142, %v47, -inf
    %v208 = vsel %vm144, %v48, -inf
    %v209 = vmax.f32 %v207, %v208
    %v210 = vrot.slane %v209, 4
    %v211 = vmax.f32 %v209, %v210
    %v212 = vrot.slane %v211, 2
    %v213 = vmax.f32 %v211, %v212
    %v214 = vrot.slane %v213, 1
    %v215 = vmax.f32 %v213, %v214
    %216 = vset.pattern.permute.xlu0 1
    %217 = vperm.xlu0 %216, %v49
    %v218 = vpop.permute.xlu0 %217
    %v219 = vrot.slane %v218, 1
    %v220 = vrot.slane %v218, 2
    %v221 = vrot.slane %v218, 3
    %v222 = vrot.slane %v218, 4
    %v223 = vrot.slane %v218, 5
    %v224 = vrot.slane %v218, 6
    %v225 = vrot.slane %v218, 7
    %v234 = vmul.f32 %v152, %v218
    %v235 = vmul.f32 %v161, %v219
    %v236 = vmul.f32 %v170, %v220
    %v237 = vmul.f32 %v179, %v221
    %v238 = vmul.f32 %v188, %v222
    %v239 = vmul.f32 %v197, %v223
    %v240 = vmul.f32 %v206, %v224
    %v241 = vmul.f32 %v215, %v225
    %v242 = vadd.f32 %v134, %v234
    %v243 = vadd.f32 %v135, %v235
    %v244 = vadd.f32 %v136, %v236
    %v245 = vadd.f32 %v137, %v237
    %v246 = vadd.f32 %v138, %v238
    %v247 = vadd.f32 %v139, %v239
    %v248 = vadd.f32 %v140, %v240
    %v249 = vadd.f32 %v141, %v241
    %v250 = vsel %vm50, %v34, -inf
    %v251 = vrot.slane %v250, 4
    %v252 = vmax.f32 %v250, %v251
    %v253 = vrot.slane %v252, 2
    %v254 = vmax.f32 %v252, %v253
    %v255 = vrot.slane %v254, 1
    %v256 = vmax.f32 %v254, %v255
    %v257 = vsel %vm50, %v36, -inf
    %v258 = vrot.slane %v257, 4
    %v259 = vmax.f32 %v257, %v258
    %v260 = vrot.slane %v259, 2
    %v261 = vmax.f32 %v259, %v260
    %v262 = vrot.slane %v261, 1
    %v263 = vmax.f32 %v261, %v262
    %v264 = vsel %vm50, %v38, -inf
    %v265 = vrot.slane %v264, 4
    %v266 = vmax.f32 %v264, %v265
    %v267 = vrot.slane %v266, 2
    %v268 = vmax.f32 %v266, %v267
    %v269 = vrot.slane %v268, 1
    %v270 = vmax.f32 %v268, %v269
    %v271 = vsel %vm50, %v40, -inf
    %v272 = vrot.slane %v271, 4
    %v273 = vmax.f32 %v271, %v272
    %v274 = vrot.slane %v273, 2
    %v275 = vmax.f32 %v273, %v274
    %v276 = vrot.slane %v275, 1
    %v277 = vmax.f32 %v275, %v276
    %v278 = vsel %vm50, %v42, -inf
    %v279 = vrot.slane %v278, 4
    %v280 = vmax.f32 %v278, %v279
    %v281 = vrot.slane %v280, 2
    %v282 = vmax.f32 %v280, %v281
    %v283 = vrot.slane %v282, 1
    %v284 = vmax.f32 %v282, %v283
    %v285 = vsel %vm50, %v44, -inf
    %v286 = vrot.slane %v285, 4
    %v287 = vmax.f32 %v285, %v286
    %v288 = vrot.slane %v287, 2
    %v289 = vmax.f32 %v287, %v288
    %v290 = vrot.slane %v289, 1
    %v291 = vmax.f32 %v289, %v290
    %v292 = vsel %vm50, %v46, -inf
    %v293 = vrot.slane %v292, 4
    %v294 = vmax.f32 %v292, %v293
    %v295 = vrot.slane %v294, 2
    %v296 = vmax.f32 %v294, %v295
    %v297 = vrot.slane %v296, 1
    %v298 = vmax.f32 %v296, %v297
    %v299 = vsel %vm50, %v48, -inf
    %v300 = vrot.slane %v299, 4
    %v301 = vmax.f32 %v299, %v300
    %v302 = vrot.slane %v301, 2
    %v303 = vmax.f32 %v301, %v302
    %v304 = vrot.slane %v303, 1
    %v305 = vmax.f32 %v303, %v304
    %306 = vset.pattern.permute.xlu0 2
    %307 = vperm.xlu0 %306, %v49
    %v308 = vpop.permute.xlu0 %307
    %v309 = vrot.slane %v308, 1
    %v310 = vrot.slane %v308, 2
    %v311 = vrot.slane %v308, 3
    %v312 = vrot.slane %v308, 4
    %v313 = vrot.slane %v308, 5
    %v314 = vrot.slane %v308, 6
    %v315 = vrot.slane %v308, 7
    %v324 = vmul.f32 %v256, %v308
    %v325 = vmul.f32 %v263, %v309
    %v326 = vmul.f32 %v270, %v310
    %v327 = vmul.f32 %v277, %v311
    %v328 = vmul.f32 %v284, %v312
    %v329 = vmul.f32 %v291, %v313
    %v330 = vmul.f32 %v298, %v314
    %v331 = vmul.f32 %v305, %v315
    %v332 = vadd.f32 %v242, %v324
    %v333 = vadd.f32 %v243, %v325
    %v334 = vadd.f32 %v244, %v326
    %v335 = vadd.f32 %v245, %v327
    %v336 = vadd.f32 %v246, %v328
    %v337 = vadd.f32 %v247, %v329
    %v338 = vadd.f32 %v248, %v330
    %v339 = vadd.f32 %v249, %v331
    %v348 = vrot.slane %v333, 7
    %vm349 = vcmask 1041409
    %v350 = vsel %vm349, %v348, %v332
    %v351 = vrot.slane %v334, 6
    %vm352 = vcmask 1042434
    %v353 = vsel %vm352, %v351, %v350
    %v354 = vrot.slane %v335, 5
    %vm355 = vcmask 1043459
    %v356 = vsel %vm355, %v354, %v353
    %v357 = vrot.slane %v336, 4
    %vm358 = vcmask 1044484
    %v359 = vsel %vm358, %v357, %v356
    %v360 = vrot.slane %v337, 3
    %vm361 = vcmask 1045509
    %v362 = vsel %vm361, %v360, %v359
    %v363 = vrot.slane %v338, 2
    %vm364 = vcmask 1046534
    %v365 = vsel %vm364, %v363, %v362
    %v366 = vrot.slane %v339, 1
    %vm367 = vcmask 1047559
    %v368 = vsel %vm367, %v366, %v365
    %vm370 = vcmask 15360
    %v371 = vsel %vm370, %v368, 0.0
    %v372 = vrot.slane %v371, 4
    %v373 = vadd.f32 %v371, %v372
    %v374 = vrot.slane %v373, 2
    %v375 = vadd.f32 %v373, %v374
    %v376 = vrot.slane %v375, 1
    %v377 = vadd.f32 %v375, %v376
    %s378 = sld [smem:[#allocation2]]
    %v379 = vstv %s378
    %v380 = vadd.f32 %v377, %v379
    %vm381 = vcmask 8192
    %382 = vst.msk [vmem:[#allocation3] sm:$0x1] %vm381, %v380
    // Predicated region
    $region14: #{tpu_custom_call.1} parent=1 // pred_check
      _
    $region15: #{tpu_custom_call.1} parent=1 // pred_check_branch
      %384 = sbr.rel (0) target = $region17
    $region16: #{tpu_custom_call.1} parent=1 // pred_region
      %386 = vsyncadd [#allocation4], 0
      %s388 = sshll.u32 [#allocation3], 4
      %s389 = int_to_ptr.vmem [resolvable:$true] %s388
      %s390 = sshll.u32 %s3, 4
      %s391 = int_to_ptr.hbm [resolvable:$true] %s390
      %393 = dma.vmem_to_hbm [thread:$0]  %s389, 16, %s391, [#allocation4]
    $region17: #{tpu_custom_call.1} parent=1 // pred_fallthru
      _
    // Predicated region
    $region18: #{tpu_custom_call.1} parent=1 // pred_check
      _
    $region19: #{tpu_custom_call.1} parent=1 // pred_check_branch
      %395 = sbr.rel (0) target = $region21
    $region20: #{tpu_custom_call.1} parent=1 // pred_region
      %397 = dma.done [#allocation4], 16
    $region21: #{tpu_custom_call.1} parent=1 // pred_fallthru
      _
    %398 = vsyncpa [#allocation4], 1

</llo_original>
